<compile_context>
chip_gen: v7x
topology: tpu7x:2x2x1
jax: 0.10.0
libtpu: 0.0.40
codegen_flags: <defaults>
</compile_context>

<pallas_src>
import jax
import jax.numpy as jnp
from jax.experimental import pallas as pl
from jax.experimental.pallas import tpu as pltpu

_MiB = 1024 * 1024


def _sublane_quantum(itemsize):
    # Rows packed per sublane tile: f32 -> 8, bf16/f16 -> 16, int8/fp8 -> 32.
    return max(8, 32 // int(itemsize))


def _divisor_tiles(dim, quantum):
    """Divisors of `dim` that are multiples of `quantum`, plus `dim` itself
    (a full-extent block is always layout-legal). Sorted descending."""
    cands = {d for d in range(quantum, dim + 1, quantum) if dim % d == 0}
    cands.add(dim)
    return sorted(cands, reverse=True)


def _partial_kernel(t_ref, p_ref, out_ref):
    """Per-block partial sums.

    out_ref block is (tile_n, 2): column 0 = sum(d**2), column 1 = sum(|d|),
    reduced over everything except the leading sample axis.  Written with a
    single store.
    """
    d = t_ref[...].astype(jnp.float32) - p_ref[...].astype(jnp.float32)
    sq = d * d
    ab = jnp.abs(d)
    # Collapse any middle axes first (cheap sublane/major-axis adds), keep 2-D.
    while sq.ndim > 2:
        sq = jnp.sum(sq, axis=1)
        ab = jnp.sum(ab, axis=1)
    sq_col = jnp.sum(sq, axis=1, keepdims=True)   # (tile_n, 1)
    ab_col = jnp.sum(ab, axis=1, keepdims=True)   # (tile_n, 1)
    tn = out_ref.shape[0]
    col = jax.lax.broadcasted_iota(jnp.int32, (tn, 2), 1)
    out_ref[...] = jnp.where(col == 0,
                             jnp.broadcast_to(sq_col, (tn, 2)),
                             jnp.broadcast_to(ab_col, (tn, 2)))


def _pick_tiles_flat(N, HW, itemsize, vmem_budget, *,
                     block_cap=8 * _MiB, block_floor=256 * 1024, min_steps=4):
    """Tiles for the lane-dense (N, C*HW) path. Requires HW % 128 == 0."""
    q = _sublane_quantum(itemsize)
    n_cands = _divisor_tiles(N, q)
    hw_cands = sorted({d for d in range(128, HW + 1, 128) if HW % d == 0},
                      reverse=True)

    def in_bytes(tn, thw):
        return tn * thw * itemsize

    def vmem_est(tn, thw):
        # 2 inputs x 2 pipeline buffers + ~2 blocks of f32 temporaries.
        return 4 * in_bytes(tn, thw) + 2 * tn * thw * 4

    # >=2 blocks along the (parallel) sample axis when possible, so both v7x
    # TensorCores get work.
    halved = [c for c in n_cands if c <= N // 2]
    tile_n = halved[0] if halved else n_cands[-1]
    n_n = N // tile_n

    fits = [c for c in hw_cands
            if vmem_est(tile_n, c) <= vmem_budget
            and in_bytes(tile_n, c) <= block_cap]
    if not fits:
        fits = [hw_cands[-1]]          # smallest legal block (tiny problems)
    # Guarantee >= min_steps grid steps for DMA/compute overlap while keeping
    # blocks big enough to amortize the ~0.35us per-step overhead.
    big = [c for c in fits if in_bytes(tile_n, c) >= block_floor] or fits
    enough = [c for c in big if n_n * (HW // c) >= min_steps]
    tile_hw = enough[0] if enough else big[-1]
    return tile_n, tile_hw


def _pick_tiles_4d(N, H, W, itemsize, vmem_budget, *, block_cap=8 * _MiB):
    """Tiles for the fallback (N, C, H, W) path (H*W not a multiple of 128)."""
    q = _sublane_quantum(itemsize)
    w_pad = -(-W // 128) * 128
    h_cands = _divisor_tiles(H, q)                      # includes full H
    n_cands = sorted({d for d in range(1, N + 1) if N % d == 0}, reverse=True)

    def in_bytes(tn, th):
        th_pad = -(-th // q) * q
        return tn * th_pad * w_pad * itemsize

    def fits(tn, th):
        f32_tmp = 2 * tn * (-(-th // 8) * 8) * w_pad * 4
        return (4 * in_bytes(tn, th) + f32_tmp <= vmem_budget
                and in_bytes(tn, th) <= block_cap)

    # Prefer >=2 sample blocks (megacore / pipelining) and full-H tiles
    # (longest contiguous DMA runs); shrink tile_n first, then tile_h.
    pref = [c for c in n_cands if c <= N // 2] or [n_cands[-1]]
    for tn in pref:
        if fits(tn, H):
            return tn, H
    for th in h_cands:
        if fits(1, th):
            return 1, th
    return 1, h_cands[-1]


def weighted_mse_mae(truth_all, pred_all, radar_weight=1.0, ele_weight=1.0,
                     block_cap_bytes=8 * _MiB, min_grid_steps=4):
    """Pallas TPU implementation of Weighted_mse_mae.forward (radar branch)."""
    assert truth_all.shape == pred_all.shape
    assert truth_all.dtype == pred_all.dtype
    S, B, C, H, W = truth_all.shape
    N = S * B
    HW = H * W
    itemsize = jnp.dtype(truth_all.dtype).itemsize

    # Generation-aware VMEM budget (48 MiB on v7x, 64 MiB on v5e/v6e).
    try:
        vmem_cap = int(pltpu.get_tpu_info().vmem_capacity_bytes)
    except Exception:
        vmem_cap = 64 * _MiB
    vmem_limit = min(3 * vmem_cap // 4, 64 * _MiB)
    vmem_budget = max(vmem_limit - 4 * _MiB, vmem_limit // 2)

    cost = pl.CostEstimate(flops=5 * N * HW, transcendentals=0,
                           bytes_accessed=2 * N * HW * itemsize)
    params = pltpu.CompilerParams(
        dimension_semantics=("parallel", "parallel"),
        vmem_limit_bytes=int(vmem_limit),
    )

    if HW % 128 == 0:
        # Lane-dense path: merge (S,B)->N and (C,H,W)->C*HW (free reshapes),
        # tile only channel 0's [0, HW) columns directly from HBM.
        tile_n, tile_hw = _pick_tiles_flat(
            N, HW, itemsize, vmem_budget,
            block_cap=block_cap_bytes, min_steps=min_grid_steps)
        n_n, n_hw = N // tile_n, HW // tile_hw
        t2 = truth_all.reshape(N, C * HW)
        p2 = pred_all.reshape(N, C * HW)
        in_spec = pl.BlockSpec((tile_n, tile_hw), lambda i, j: (i, j))
    else:
        # Fallback: keep W as the (full-extent, always legal) lane dim and
        # read channel 0 via a squeezed channel block (single HBM pass).
        tile_n, tile_h = _pick_tiles_4d(N, H, W, itemsize, vmem_budget,
                                        block_cap=block_cap_bytes)
        n_n, n_hw = N // tile_n, H // tile_h
        t2 = truth_all.reshape(N, C, H, W)
        p2 = pred_all.reshape(N, C, H, W)
        in_spec = pl.BlockSpec((tile_n, pl.Squeezed(), tile_h, W),
                               lambda i, j: (i, 0, j, 0))

    out_spec = pl.BlockSpec((pl.Squeezed(), pl.Squeezed(), tile_n, 2),
                            lambda i, j: (i, j, 0, 0))
    partials = pl.pallas_call(
        _partial_kernel,
        out_shape=jax.ShapeDtypeStruct((n_n, n_hw, tile_n, 2), jnp.float32),
        grid=(n_n, n_hw),
        in_specs=[in_spec, in_spec],
        out_specs=out_spec,
        compiler_params=params,
        cost_estimate=cost,
    )(t2, p2)

    # (sum(d^2) + sum(|d|)) / N  ==  mean(per-sample mse) + mean(per-sample mae)
    # Radar-only branch: loss_all = loss (radar_weight/ele_weight unused).
    return jnp.sum(partials) / jnp.float32(N)


def _reference(truth_all, pred_all):
    truth = truth_all[:, :, 0:1].astype(jnp.float32)
    pred = pred_all[:, :, 0:1].astype(jnp.float32)
    differ = truth - pred
    mse = jnp.sum(differ ** 2, axis=(2, 3, 4))
    mae = jnp.sum(jnp.abs(differ), axis=(2, 3, 4))
    return jnp.mean(mse) + jnp.mean(mae)


if __name__ == "__main__":
    key = jax.random.PRNGKey(0)
    k1, k2, k3, k4 = jax.random.split(key, 4)

    # 1) Lane-dense flat path (H*W multiple of 128): (S=8, B=2, C=4, H=16, W=16)
    #    -> grid (2, 2), blocks (8, 128).
    t1 = jax.random.normal(k1, (8, 2, 4, 16, 16), dtype=jnp.float32)
    p1 = jax.random.normal(k2, (8, 2, 4, 16, 16), dtype=jnp.float32)
    out1 = jax.block_until_ready(weighted_mse_mae(t1, p1))
    ref1 = jax.block_until_ready(_reference(t1, p1))
    assert jnp.allclose(out1, ref1, rtol=1e-5, atol=1e-5), (out1, ref1)

    # 2) Fallback path (H*W not a multiple of 128): (8, 2, 4, 12, 12)
    #    -> grid (2, 1), blocks (8, 12, 12) with channel squeezed.
    t2 = jax.random.normal(k3, (8, 2, 4, 12, 12), dtype=jnp.float32)
    p2 = jax.random.normal(k4, (8, 2, 4, 12, 12), dtype=jnp.float32)
    out2 = jax.block_until_ready(weighted_mse_mae(t2, p2))
    ref2 = jax.block_until_ready(_reference(t2, p2))
    assert jnp.allclose(out2, ref2, rtol=1e-5, atol=1e-5), (out2, ref2)

    # 3) bf16 inputs: dtype-aware sublane quantum (16), f32 accumulation in-kernel.
    t3 = t1.astype(jnp.bfloat16)
    p3 = p1.astype(jnp.bfloat16)
    out3 = jax.block_until_ready(weighted_mse_mae(t3, p3))
    ref3 = jax.block_until_ready(_reference(t3, p3))
    assert jnp.allclose(out3, ref3, rtol=1e-3, atol=1e-2), (out3, ref3)

    print("KERNEL_OK")
</pallas_src>

<mosaic_0001>
module attributes {stable_mosaic.version = 11 : i64} {
  func.func @_partial_kernel(%arg0: i32, %arg1: i32, %arg2: memref<8x128xf32, #tpu.memory_space<vmem>>, %arg3: memref<8x128xf32, #tpu.memory_space<vmem>>, %arg4: memref<1x1x8x2xf32, #tpu.memory_space<vmem>>) attributes {dimension_semantics = [#tpu.dimension_semantics<parallel>, #tpu.dimension_semantics<parallel>], iteration_bounds = array<i64: 2, 2>, scalar_prefetch = 0 : i64, scratch_operands = 0 : i64, tpu.core_type = #tpu.core_type<tc>, window_params = [{transform_indices = @transform_0, window_bounds = array<i64: 8, 128>}, {transform_indices = @transform_1, window_bounds = array<i64: 8, 128>}, {transform_indices = @transform_2, window_bounds = array<i64: 1, 1, 8, 2>}]} {
    %c0 = arith.constant 0 : index
    %c0_0 = arith.constant 0 : index
    %0 = vector.load %arg2[%c0, %c0_0] : memref<8x128xf32, #tpu.memory_space<vmem>>, vector<8x128xf32>
    %c0_1 = arith.constant 0 : index
    %c0_2 = arith.constant 0 : index
    %1 = vector.load %arg3[%c0_1, %c0_2] : memref<8x128xf32, #tpu.memory_space<vmem>>, vector<8x128xf32>
    %2 = arith.subf %0, %1 : vector<8x128xf32>
    %3 = arith.mulf %2, %2 : vector<8x128xf32>
    %4 = math.absf %2 : vector<8x128xf32>
    %cst = arith.constant dense<0.000000e+00> : vector<8xf32>
    %5 = vector.multi_reduction <add>, %3, %cst [1] : vector<8x128xf32> to vector<8xf32>
    %6 = vector.shape_cast %5 : vector<8xf32> to vector<8x1xf32>
    %cst_3 = arith.constant dense<0.000000e+00> : vector<8xf32>
    %7 = vector.multi_reduction <add>, %4, %cst_3 [1] : vector<8x128xf32> to vector<8xf32>
    %8 = vector.shape_cast %7 : vector<8xf32> to vector<8x1xf32>
    %9 = tpu.iota {dimensions = array<i32: 1>} : vector<8x2xi32>
    %c0_i32 = arith.constant 0 : i32
    %10 = vector.broadcast %c0_i32 : i32 to vector<8x2xi32>
    %11 = arith.cmpi eq, %9, %10 : vector<8x2xi32>
    %12 = vector.shape_cast %6 : vector<8x1xf32> to vector<8x1xf32>
    %13 = vector.broadcast %12 : vector<8x1xf32> to vector<8x2xf32>
    %14 = vector.shape_cast %8 : vector<8x1xf32> to vector<8x1xf32>
    %15 = vector.broadcast %14 : vector<8x1xf32> to vector<8x2xf32>
    %16 = arith.select %11, %13, %15 : vector<8x2xi1>, vector<8x2xf32>
    %c0_4 = arith.constant 0 : index
    %c0_5 = arith.constant 0 : index
    %c0_6 = arith.constant 0 : index
    %c0_7 = arith.constant 0 : index
    %17 = vector.load %arg4[%c0_4, %c0_5, %c0_6, %c0_7] : memref<1x1x8x2xf32, #tpu.memory_space<vmem>>, vector<1x1x8x2xf32>
    %18 = vector.shape_cast %17 : vector<1x1x8x2xf32> to vector<8x2xf32>
    %19 = vector.shape_cast %16 : vector<8x2xf32> to vector<1x1x8x2xf32>
    tpu.vector_store %arg4[%c0_4, %c0_5, %c0_6, %c0_7], %19 {strides = array<i32>} : memref<1x1x8x2xf32, #tpu.memory_space<vmem>>, vector<1x1x8x2xf32>,
    return
  }
  func.func @transform_0(%arg0: i32, %arg1: i32) -> (i32, i32) {
    %c0_i32 = arith.constant 0 : i32
    return %arg0, %arg1 : i32, i32
  }
  func.func @transform_1(%arg0: i32, %arg1: i32) -> (i32, i32) {
    %c0_i32 = arith.constant 0 : i32
    return %arg0, %arg1 : i32, i32
  }
  func.func @transform_2(%arg0: i32, %arg1: i32) -> (i32, i32, i32, i32) {
    %c0_i32 = arith.constant 0 : i32
    %c0_i32_0 = arith.constant 0 : i32
    %c0_i32_1 = arith.constant 0 : i32
    return %arg0, %arg1, %c0_i32, %c0_i32_0 : i32, i32, i32, i32
  }
}

</mosaic_0001>

<llo_original>
// kernel: tpu_custom_call.1
$region0: #{tpu_custom_call.1}
  #allocation0 [shape = 'u32[]', space=smem, size = 0x4, offset = 0x4, fixed_abs, tag = 'smem constant byte address 0x4 - core index']
  #allocation1 [shape = 'u32[144,128]{1,0:T(1,128)}', space=vmem, size = 0x12000, scoped, tag = 'internal scratch']
  %s0 = inlined_call_operand.hbm [shape: f32[16,1024], index: 0, kind: input, shape index: {}]
  %s1 = inlined_call_operand.hbm [shape: f32[16,1024], index: 1, kind: input, shape index: {}]
  %s2 = inlined_call_operand.vmem [shape: f32[2,2,8,2], index: 2, kind: output, shape index: {}]
  %s3 = sld [smem:[#allocation0]]
  $region49: #{tpu_custom_call.1} parent=0
    _
  %s5 = ssub.s32 1, %s3
  %s6 = scalar_select 0, %s5, %s3
  $region1: #{tpu_custom_call.1} parent=0
    #allocation2 [shape = 'u8[8192]{0}', space=vmem, size = 0x2000, scoped, tag = 'input window, operand 0']
    #allocation3 [shape = 's32[2]{0}', space=sflag, size = 0x8, scoped, tag = 'scoped memory for tpu_custom_call.1']
    #allocation4 [shape = 'u8[8192]{0}', space=vmem, size = 0x2000, scoped, tag = 'input window, operand 1']
    #allocation5 [shape = 's32[2]{0}', space=sflag, size = 0x8, scoped, tag = 'scoped memory for tpu_custom_call.1']
    %7 = vsyncpa [#allocation3], 0
    %s8 = scalar_lea.sflag [#allocation3], 1
    %9 = vsyncpa %s8, 0
    %10 = vsyncpa [#allocation5], 0
    %s11 = scalar_lea.sflag [#allocation5], 1
    %12 = vsyncpa %s11, 0
    loop: start=0, step=1, limit=6
    $region2: #{tpu_custom_call.1} parent=1 // loop_pre_header
      _
    $region3: #{tpu_custom_call.1} parent=1 // loop_header
      %s14 = sphi 0, %s18
      %p15 = scmp.ge.s32.totalorder %s14, 6
      %s21 = sphi 0, %s33
      %s22 = sphi 0, %s29
      %s23 = sphi 0, %s21
      %s24 = sphi 0, %s22
      %s25 = sphi 0, %s23
      %s26 = sphi 0, %s24
      %s38 = sphi 0, %s40
      %s41 = sphi 0, %s38
      %s42 = sphi 0, %s41
      %s58 = sphi 0, %s42
      %s66 = sphi 0, %s68
      %s69 = sphi 0, %s66
      %s70 = sphi 0, %s69
      %s86 = sphi 0, %s70
      %s94 = sphi 0, %s96
      %s97 = sphi 0, %s94
      %s98 = sphi 0, %s97
      %s114 = sphi 0, %s98
    $region4: #{tpu_custom_call.1} parent=1 // loop_header_branch
      %17 = sbr.rel (%p15) target = $region8
    $region5: #{tpu_custom_call.1} parent=1 // loop_body
      %s19 = ssub.s32 %s14, 1
      %s20 = ssub.s32 %s14, 2
      %s27 = sadd.s32 1, %s22
      %p28 = scmp.ge.s32.totalorder %s27, 2
      %s29 = scalar_select %p28, 0, %s27
      %s30 = sadd.s32 1, %s21
      %s31 = scalar_select %p28, %s30, %s21
      %p32 = scmp.ge.s32.totalorder %s31, 2
      %s33 = scalar_select %p32, 0, %s31
      %s34 = ssub.s32 %s21, %s33
      %s35 = ssub.s32 %s22, %s29
      %s36 = sor.u32 %s34, %s35
      %p37 = scmp.eq.s32.totalorder %s36, 0
      %s39 = sadd.s32 %s38, 1
      %s40 = scalar_select %p37, %s38, %s39
      %p43 = pneg %p37
      %p44 = scmp.eq.s32.totalorder %s14, 3
      %p45 = por %p43, %p44
      %p46 = scmp.ne.s32.totalorder %s38, %s41
      %p47 = scmp.eq.s32.totalorder %s14, 0
      %p48 = por %p46, %p47
      %p49 = scmp.ne.s32.totalorder %s38, %s41
      %p50 = scmp.eq.s32.totalorder %s19, 3
      %p51 = por %p49, %p50
      %p52 = scmp.ne.s32.totalorder %s41, %s42
      %p53 = scmp.eq.s32.totalorder %s19, 0
      %p54 = por %p52, %p53
      %p55 = scmp.ne.s32.totalorder %s41, %s42
      %p56 = scmp.eq.s32.totalorder %s20, 3
      %p57 = por %p55, %p56
      %p59 = scmp.ne.s32.totalorder %s42, %s58
      %p60 = scmp.eq.s32.totalorder %s20, 0
      %p61 = por %p59, %p60
      %s62 = ssub.s32 %s21, %s33
      %s63 = ssub.s32 %s22, %s29
      %s64 = sor.u32 %s62, %s63
      %p65 = scmp.eq.s32.totalorder %s64, 0
      %s67 = sadd.s32 %s66, 1
      %s68 = scalar_select %p65, %s66, %s67
      %p71 = pneg %p65
      %p72 = scmp.eq.s32.totalorder %s14, 3
      %p73 = por %p71, %p72
      %p74 = scmp.ne.s32.totalorder %s66, %s69
      %p75 = scmp.eq.s32.totalorder %s14, 0
      %p76 = por %p74, %p75
      %p77 = scmp.ne.s32.totalorder %s66, %s69
      %p78 = scmp.eq.s32.totalorder %s19, 3
      %p79 = por %p77, %p78
      %p80 = scmp.ne.s32.totalorder %s69, %s70
      %p81 = scmp.eq.s32.totalorder %s19, 0
      %p82 = por %p80, %p81
      %p83 = scmp.ne.s32.totalorder %s69, %s70
      %p84 = scmp.eq.s32.totalorder %s20, 3
      %p85 = por %p83, %p84
      %p87 = scmp.ne.s32.totalorder %s70, %s86
      %p88 = scmp.eq.s32.totalorder %s20, 0
      %p89 = por %p87, %p88
      %s90 = ssub.s32 %s21, %s33
      %s91 = ssub.s32 %s22, %s29
      %s92 = sor.u32 %s90, %s91
      %p93 = scmp.eq.s32.totalorder %s92, 0
      %s95 = sadd.s32 %s94, 1
      %s96 = scalar_select %p93, %s94, %s95
      %p99 = pneg %p93
      %p100 = scmp.eq.s32.totalorder %s14, 3
      %p101 = por %p99, %p100
      %p102 = scmp.ne.s32.totalorder %s94, %s97
      %p103 = scmp.eq.s32.totalorder %s14, 0
      %p104 = por %p102, %p103
      %p105 = scmp.ne.s32.totalorder %s94, %s97
      %p106 = scmp.eq.s32.totalorder %s19, 3
      %p107 = por %p105, %p106
      %p108 = scmp.ne.s32.totalorder %s97, %s98
      %p109 = scmp.eq.s32.totalorder %s19, 0
      %p110 = por %p108, %p109
      %p111 = scmp.ne.s32.totalorder %s97, %s98
      %p112 = scmp.eq.s32.totalorder %s20, 3
      %p113 = por %p111, %p112
      %p115 = scmp.ne.s32.totalorder %s98, %s114
      %p116 = scmp.eq.s32.totalorder %s20, 0
      %p117 = por %p115, %p116
      %p118 = scmp.le.s32.totalorder 1, %s14
      %p119 = scmp.lt.s32.totalorder %s14, 5
      %p120 = pnand %p118, %p119
      %p121 = pneg %p120
      // Predicated region
      $region9: #{tpu_custom_call.1} parent=5 // pred_check
        _
      $region10: #{tpu_custom_call.1} parent=5 // pred_check_branch
        %123 = sbr.rel (%p120) target = $region12
      $region11: #{tpu_custom_call.1} parent=5 // pred_region
        %s124 = ssub.s32 %s14, 1
      $region12: #{tpu_custom_call.1} parent=5 // pred_fallthru
        _
      %p125 = scmp.lt.s32.totalorder %s14, 4
      // Predicated region
      $region13: #{tpu_custom_call.1} parent=5 // pred_check
        %p126 = pneg %p125
      $region14: #{tpu_custom_call.1} parent=5 // pred_check_branch
        %128 = sbr.rel (%p126) target = $region16
      $region15: #{tpu_custom_call.1} parent=5 // pred_region
        // Predicated region
        $region17: #{tpu_custom_call.1} parent=15 // pred_check
          %p129 = pneg %p48
        $region18: #{tpu_custom_call.1} parent=15 // pred_check_branch
          %131 = sbr.rel (%p129) target = $region20
        $region19: #{tpu_custom_call.1} parent=15 // pred_region
          %s132 = sand.u32 %s38, 1
          %s133 = scalar_lea.sflag [#allocation3], %s132
          %s134 = sand.u32 %s38, 1
          %s135 = smul.addr %s134, 8
          %s136 = scalar_lea.vmem [#allocation2], %s135
          %s138 = ssub.s32 128, 128
          %139 = vsyncadd %s133, %s138
          %s140 = smul.addr %s21, 8
          %s141 = sadd.s32 %s22, %s140
          %s142 = smul.addr %s141, 128
          %s143 = scalar_lea.hbm %s0, %s142
          %s145 = sshll.u32 %s136, 4
          %s146 = int_to_ptr.vmem [resolvable:$true] %s145
          %148 = dma.hbm_to_vmem [thread:$0]  %s143, 128, %s146, %s133
        $region20: #{tpu_custom_call.1} parent=15 // pred_fallthru
          _
        // Predicated region
        $region21: #{tpu_custom_call.1} parent=15 // pred_check
          %p149 = pneg %p76
        $region22: #{tpu_custom_call.1} parent=15 // pred_check_branch
          %151 = sbr.rel (%p149) target = $region24
        $region23: #{tpu_custom_call.1} parent=15 // pred_region
          %s152 = sand.u32 %s66, 1
          %s153 = scalar_lea.sflag [#allocation5], %s152
          %s154 = sand.u32 %s66, 1
          %s155 = smul.addr %s154, 8
          %s156 = scalar_lea.vmem [#allocation4], %s155
          %s158 = ssub.s32 128, 128
          %159 = vsyncadd %s153, %s158
          %s160 = smul.addr %s21, 8
          %s161 = sadd.s32 %s22, %s160
          %s162 = smul.addr %s161, 128
          %s163 = scalar_lea.hbm %s1, %s162
          %s165 = sshll.u32 %s156, 4
          %s166 = int_to_ptr.vmem [resolvable:$true] %s165
          %168 = dma.hbm_to_vmem [thread:$0]  %s163, 128, %s166, %s153
        $region24: #{tpu_custom_call.1} parent=15 // pred_fallthru
          _
      $region16: #{tpu_custom_call.1} parent=5 // pred_fallthru
        _
      %p169 = scmp.le.s32.totalorder 1, %s14
      %p170 = scmp.lt.s32.totalorder %s14, 5
      %p171 = pnand %p169, %p170
      %p172 = pneg %p171
      // Predicated region
      $region25: #{tpu_custom_call.1} parent=5 // pred_check
        _
      $region26: #{tpu_custom_call.1} parent=5 // pred_check_branch
        %174 = sbr.rel (%p171) target = $region28
      $region27: #{tpu_custom_call.1} parent=5 // pred_region
        %s175 = ssub.s32 %s14, 1
        %s176 = sand.u32 %s41, 1
        %s177 = scalar_lea.sflag [#allocation3], %s176
        %s178 = sand.u32 %s41, 1
        %s179 = smul.addr %s178, 8
        %s180 = scalar_lea.vmem [#allocation2], %s179
        // Predicated region
        $region29: #{tpu_custom_call.1} parent=27 // pred_check
          %p181 = pneg %p54
        $region30: #{tpu_custom_call.1} parent=27 // pred_check_branch
          %183 = sbr.rel (%p181) target = $region32
        $region31: #{tpu_custom_call.1} parent=27 // pred_region
          %184 = dma.done %s177, 128
        $region32: #{tpu_custom_call.1} parent=27 // pred_fallthru
          _
        %s185 = sand.u32 %s69, 1
        %s186 = scalar_lea.sflag [#allocation5], %s185
        %s187 = sand.u32 %s69, 1
        %s188 = smul.addr %s187, 8
        %s189 = scalar_lea.vmem [#allocation4], %s188
        // Predicated region
        $region33: #{tpu_custom_call.1} parent=27 // pred_check
          %p190 = pneg %p82
        $region34: #{tpu_custom_call.1} parent=27 // pred_check_branch
          %192 = sbr.rel (%p190) target = $region36
        $region35: #{tpu_custom_call.1} parent=27 // pred_region
          %193 = dma.done %s186, 128
        $region36: #{tpu_custom_call.1} parent=27 // pred_fallthru
          _
        %s194 = sand.u32 %s41, 1
        %s195 = scalar_lea.sflag [#allocation3], %s194
        %s196 = sand.u32 %s41, 1
        %s197 = smul.addr %s196, 8
        %s198 = scalar_lea.vmem [#allocation2], %s197
        %p199 = pneg %p54
        %p200 = pneg %p51
        %s201 = sand.u32 %s69, 1
        %s202 = scalar_lea.sflag [#allocation5], %s201
        %s203 = sand.u32 %s69, 1
        %s204 = smul.addr %s203, 8
        %s205 = scalar_lea.vmem [#allocation4], %s204
        %p206 = pneg %p82
        %p207 = pneg %p79
        %p208 = pneg %p110
        %p209 = pneg %p107
        %p210 = scmp.lt.s32.totalorder %s23, 1
        %s211 = scalar_select %p210, %s23, 1
        %p212 = scmp.lt.s32.totalorder %s24, 1
        %s213 = scalar_select %p212, %s24, 1
        %s214 = smul.addr %s211, 2
        %s215 = sadd.s32 %s213, %s214
        %s216 = smul.addr %s215, 8
        %s217 = scalar_lea.vmem %s2, %s216
        %p218 = scmp.lt.s32.totalorder %s23, 1
        %s219 = scalar_select %p218, %s23, 1
        %p220 = scmp.lt.s32.totalorder %s24, 1
        %s221 = scalar_select %p220, %s24, 1
        %s222 = smul.addr %s219, 2
        %s223 = sadd.s32 %s221, %s222
        %s224 = smul.addr %s223, 8
        %s225 = scalar_lea.vmem %s2, %s224
        %v226 = vld [vmem:[%s180] sm:$0xff]
        %v227 = vld [vmem:[%s189] sm:$0xff]
        %v228 = vsub.f32 %v226, %v227
        %v229 = vmul.f32 %v228, %v228
        %v230 = vand.u32 2147483647, %v228
        %231 = vadd.xlane.f32.xlu0 %v229
        %v232 = vpop.xlane.xlu0 %231
        %233 = vadd.xlane.f32.xlu0 %v230
        %v234 = vpop.xlane.xlu0 %233
        %v235 = vlaneseq
        %v236 = vand.u32 %v235, 127
        %vm237 = vcmp.eq.s32.totalorder %v236, 0
        %v238 = vsel %vm237, %v232, %v234
        %vm239 = vcmask 15360
        %240 = vst.msk [vmem:[%s225] sm:$0xff] %vm239, %v238
        %p241 = scmp.lt.s32.totalorder %s23, 1
        %s242 = scalar_select %p241, %s23, 1
        %p243 = scmp.lt.s32.totalorder %s24, 1
        %s244 = scalar_select %p243, %s24, 1
        %s245 = smul.addr %s242, 2
        %s246 = sadd.s32 %s244, %s245
        %s247 = smul.addr %s246, 8
        %s248 = scalar_lea.vmem %s2, %s247
        // Predicated region
        $region37: #{tpu_custom_call.1} parent=27 // pred_check
          %p249 = pneg %p107
        $region38: #{tpu_custom_call.1} parent=27 // pred_check_branch
          %251 = sbr.rel (%p249) target = $region40
        $region39: #{tpu_custom_call.1} parent=27 // pred_region
          _
        $region40: #{tpu_custom_call.1} parent=27 // pred_fallthru
          _
      $region28: #{tpu_custom_call.1} parent=5 // pred_fallthru
        _
      %p252 = scmp.le.s32.totalorder 2, %s14
      // Predicated region
      $region41: #{tpu_custom_call.1} parent=5 // pred_check
        %p253 = pneg %p252
      $region42: #{tpu_custom_call.1} parent=5 // pred_check_branch
        %255 = sbr.rel (%p253) target = $region44
      $region43: #{tpu_custom_call.1} parent=5 // pred_region
        %s256 = ssub.s32 %s14, 2
        // Predicated region
        $region45: #{tpu_custom_call.1} parent=43 // pred_check
          %p257 = pneg %p113
        $region46: #{tpu_custom_call.1} parent=43 // pred_check_branch
          %259 = sbr.rel (%p257) target = $region48
        $region47: #{tpu_custom_call.1} parent=43 // pred_region
          %p260 = scmp.lt.s32.totalorder %s25, 1
          %s261 = scalar_select %p260, %s25, 1
          %p262 = scmp.lt.s32.totalorder %s26, 1
          %s263 = scalar_select %p262, %s26, 1
          %s264 = smul.addr %s261, 2
          %s265 = sadd.s32 %s263, %s264
          %s266 = smul.addr %s265, 8
          %s267 = scalar_lea.vmem %s2, %s266
        $region48: #{tpu_custom_call.1} parent=43 // pred_fallthru
          _
      $region44: #{tpu_custom_call.1} parent=5 // pred_fallthru
        _
    $region6: #{tpu_custom_call.1} parent=1 // loop_footer
      %s18 = sadd.s32 1, %s14
    $region7: #{tpu_custom_call.1} parent=1 // loop_footer_branch
      %13 = sbr.rel target = $region3
    $region8: #{tpu_custom_call.1} parent=1 // loop_exit
      _
    %268 = vsyncpa [#allocation3], 1
    %s269 = scalar_lea.sflag [#allocation3], 1
    %270 = vsyncpa %s269, 1
    %271 = vsyncpa [#allocation5], 1
    %s272 = scalar_lea.sflag [#allocation5], 1
    %273 = vsyncpa %s272, 1

</llo_original>
